<compile_context>
chip_gen: v6e
topology: v6e:2x2x1
jax: 0.10.0
libtpu: 0.0.40
codegen_flags: <defaults>
</compile_context>

<pallas_src>
import numpy as np
import jax
import jax.numpy as jnp
from jax import lax
from jax.experimental import pallas as pl
from jax.experimental.pallas import tpu as pltpu


_VMEM = pl.BlockSpec(memory_space=pltpu.MemorySpace.VMEM)


# ---------------------------- Pallas kernel ----------------------------

def lstm_kernel(x_ref, w_ref, b_ref, o_ref):
    """Fused single-layer LSTM forward, zero initial (h0, c0).

    x_ref : (T*B, D)  bf16  time-major, pre-flattened input sequence
    w_ref : (D+H, 4H) bf16  [W_ih^T ; W_hh^T], gate order [i,f,g,o],
                            i/f/o columns pre-scaled by 0.5
    b_ref : (1, 4H)   f32   b_ih + b_hh, i/f/o columns pre-scaled by 0.5
    o_ref : (B, T, H) f32   hidden state of every timestep, batch-first
    """
    B, T, H = o_ref.shape
    D = x_ref.shape[1]

    # Weights stay resident; W_hh is loaded once (loop-invariant MXU RHS).
    wih = w_ref[0:D, :]            # (D, 4H) bf16
    whh = w_ref[D:D + H, :]        # (H, 4H) bf16
    bias = b_ref[...]              # (1, 4H) f32

    # All-timestep input projection in one fat MXU matmul:
    # (T*B, D)bf16 @ (D, 4H)bf16 -> f32, bias fused in f32.
    xg = jnp.dot(x_ref[...], wih, preferred_element_type=jnp.float32) + bias

    h = jnp.zeros((B, H), jnp.float32)
    c = jnp.zeros((B, H), jnp.float32)

    # T is small & static -> fully unrolled; (h, c) live in vregs.
    for t in range(T):
        pre = xg[t * B:(t + 1) * B, :] + jnp.dot(
            h.astype(jnp.bfloat16), whh, preferred_element_type=jnp.float32)
        # One full-width tanh: i/f/o columns were pre-scaled by 0.5, so
        # sigmoid(z) = 0.5 * tanh(z/2) + 0.5 is recovered with a VPU FMA.
        a = jnp.tanh(pre)                          # (B, 4H) f32, single EUP pass
        i = 0.5 * a[:, 0 * H:1 * H] + 0.5
        f = 0.5 * a[:, 1 * H:2 * H] + 0.5
        g = a[:, 2 * H:3 * H]
        o = 0.5 * a[:, 3 * H:4 * H] + 0.5
        c = f * c + i * g
        h = o * jnp.tanh(c)
        o_ref[:, t, :] = h                         # batch-first store, off the chain


# ---------------------------- Wrappers ----------------------------

def prepare_params(w_ih, w_hh, b_ih, b_hh):
    """One-time weight re-layout (kept OUT of the forward path).

    Returns (w_cat, bias):
      w_cat: (D+H, 4H) bf16 = [W_ih^T ; W_hh^T] with i/f/o columns * 0.5
      bias : (1, 4H)   f32  = (b_ih + b_hh)     with i/f/o columns * 0.5
    """
    h4 = w_ih.shape[0]                    # 4*H
    H = h4 // 4
    scale = np.ones((h4,), np.float32)
    scale[0 * H:2 * H] = 0.5              # i, f
    scale[3 * H:4 * H] = 0.5              # o   (g stays 1.0)
    scale = jnp.asarray(scale)

    w_cat = jnp.concatenate([jnp.transpose(w_ih), jnp.transpose(w_hh)], axis=0)
    w_cat = (w_cat * scale[None, :]).astype(jnp.bfloat16)        # (D+H, 4H)
    bias = ((b_ih + b_hh) * scale).reshape(1, h4).astype(jnp.float32)
    return w_cat, bias


@jax.jit
def lstm_forward(x, w_cat, bias):
    B, T, D = x.shape
    H = bias.shape[1] // 4
    # One-time tiny (4 KB) layout fix outside the kernel: batch_first ->
    # time-major, flattened, bf16 MXU operand.
    x_tm = jnp.transpose(x, (1, 0, 2)).reshape(T * B, D).astype(jnp.bfloat16)
    return pl.pallas_call(
        lstm_kernel,
        out_shape=jax.ShapeDtypeStruct((B, T, H), jnp.float32),
        in_specs=[_VMEM, _VMEM, _VMEM],
        out_specs=_VMEM,
    )(x_tm, w_cat, bias)


# ---------------------------- Pure-JAX reference ----------------------------

def ref_lstm(x, w_ih, w_hh, b_ih, b_hh):
    """f32 reference matching PyTorch nn.LSTM semantics (gate order i, f, g, o)."""
    B = x.shape[0]
    H = w_hh.shape[1]

    def step(carry, x_t):
        h, c = carry
        gates = x_t @ w_ih.T + b_ih + h @ w_hh.T + b_hh
        i, f, g, o = jnp.split(gates, 4, axis=-1)
        c = jax.nn.sigmoid(f) * c + jax.nn.sigmoid(i) * jnp.tanh(g)
        h = jax.nn.sigmoid(o) * jnp.tanh(c)
        return (h, c), h

    h0 = jnp.zeros((B, H), jnp.float32)
    c0 = jnp.zeros((B, H), jnp.float32)
    _, hs = lax.scan(step, (h0, c0), jnp.transpose(x, (1, 0, 2)))
    return jnp.transpose(hs, (1, 0, 2))


# ---------------------------- Test ----------------------------

if __name__ == "__main__":
    B, T, D, H = 2, 8, 64, 64            # batch=2, seq=8, module defaults 64/64
    key = jax.random.PRNGKey(0)
    kx, k1, k2, k3, k4 = jax.random.split(key, 5)

    bound = 1.0 / np.sqrt(H)             # PyTorch default uniform init
    w_ih = jax.random.uniform(k1, (4 * H, D), jnp.float32, -bound, bound)
    w_hh = jax.random.uniform(k2, (4 * H, H), jnp.float32, -bound, bound)
    b_ih = jax.random.uniform(k3, (4 * H,), jnp.float32, -bound, bound)
    b_hh = jax.random.uniform(k4, (4 * H,), jnp.float32, -bound, bound)
    x = jax.random.normal(kx, (B, T, D), jnp.float32)

    w_cat, bias = prepare_params(w_ih, w_hh, b_ih, b_hh)

    out = jax.block_until_ready(lstm_forward(x, w_cat, bias))
    assert out.shape == (B, T, H), out.shape

    ref = jax.block_until_ready(ref_lstm(x, w_ih, w_hh, b_ih, b_hh))
    # bf16 MXU operands over an 8-step recurrence -> loosened tolerance vs the
    # pure-f32 reference (observed error is a few 1e-3).
    np.testing.assert_allclose(np.asarray(out), np.asarray(ref),
                               atol=2e-2, rtol=2e-2)
    print("KERNEL_OK")
</pallas_src>

<mosaic_0001>
module attributes {stable_mosaic.version = 11 : i64} {
  func.func @lstm_kernel(%arg0: memref<16x64xbf16, #tpu.memory_space<vmem>>, %arg1: memref<128x256xbf16, #tpu.memory_space<vmem>>, %arg2: memref<1x256xf32, #tpu.memory_space<vmem>>, %arg3: memref<2x8x64xf32, #tpu.memory_space<vmem>>) attributes {dimension_semantics = [], scalar_prefetch = 0 : i64, scratch_operands = 0 : i64, tpu.core_type = #tpu.core_type<tc>} {
    %c0 = arith.constant 0 : index
    %c0_0 = arith.constant 0 : index
    %0 = vector.load %arg1[%c0, %c0_0] : memref<128x256xbf16, #tpu.memory_space<vmem>>, vector<64x256xbf16>
    %c64 = arith.constant 64 : index
    %c0_1 = arith.constant 0 : index
    %1 = vector.load %arg1[%c64, %c0_1] : memref<128x256xbf16, #tpu.memory_space<vmem>>, vector<64x256xbf16>
    %c0_2 = arith.constant 0 : index
    %c0_3 = arith.constant 0 : index
    %2 = vector.load %arg2[%c0_2, %c0_3] : memref<1x256xf32, #tpu.memory_space<vmem>>, vector<1x256xf32>
    %c0_4 = arith.constant 0 : index
    %c0_5 = arith.constant 0 : index
    %3 = vector.load %arg0[%c0_4, %c0_5] : memref<16x64xbf16, #tpu.memory_space<vmem>>, vector<16x64xbf16>
    %cst = arith.constant dense<0.000000e+00> : vector<16x256xf32>
    %4 = tpu.matmul %3, %0, %cst {dimension_numbers = #tpu.dot_dimension_numbers<[1], [0], [0], [1], [0, 0, 1, 1], [], []>} : vector<16x64xbf16>, vector<64x256xbf16>, vector<16x256xf32> -> vector<16x256xf32>
    %5 = vector.broadcast %2 : vector<1x256xf32> to vector<16x256xf32>
    %6 = arith.addf %4, %5 : vector<16x256xf32>
    %cst_6 = arith.constant 0.000000e+00 : f32
    %7 = vector.broadcast %cst_6 : f32 to vector<2x64xf32>
    %cst_7 = arith.constant 0.000000e+00 : f32
    %8 = vector.broadcast %cst_7 : f32 to vector<2x64xf32>
    %9 = vector.extract_strided_slice %6 {offsets = [0, 0], sizes = [2, 256], strides = [1, 1]} : vector<16x256xf32> to vector<2x256xf32>
    %10 = arith.truncf %7 : vector<2x64xf32> to vector<2x64xbf16>
    %cst_8 = arith.constant dense<0.000000e+00> : vector<2x256xf32>
    %11 = tpu.matmul %10, %1, %cst_8 {dimension_numbers = #tpu.dot_dimension_numbers<[1], [0], [0], [1], [0, 0, 1, 1], [], []>} : vector<2x64xbf16>, vector<64x256xbf16>, vector<2x256xf32> -> vector<2x256xf32>
    %12 = arith.addf %9, %11 : vector<2x256xf32>
    %13 = math.tanh %12 : vector<2x256xf32>
    %14 = vector.extract_strided_slice %13 {offsets = [0, 0], sizes = [2, 64], strides = [1, 1]} : vector<2x256xf32> to vector<2x64xf32>
    %cst_9 = arith.constant 5.000000e-01 : f32
    %15 = vector.broadcast %cst_9 : f32 to vector<2x64xf32>
    %16 = arith.mulf %15, %14 : vector<2x64xf32>
    %cst_10 = arith.constant 5.000000e-01 : f32
    %17 = vector.broadcast %cst_10 : f32 to vector<2x64xf32>
    %18 = arith.addf %16, %17 : vector<2x64xf32>
    %19 = vector.extract_strided_slice %13 {offsets = [0, 64], sizes = [2, 64], strides = [1, 1]} : vector<2x256xf32> to vector<2x64xf32>
    %cst_11 = arith.constant 5.000000e-01 : f32
    %20 = vector.broadcast %cst_11 : f32 to vector<2x64xf32>
    %21 = arith.mulf %20, %19 : vector<2x64xf32>
    %cst_12 = arith.constant 5.000000e-01 : f32
    %22 = vector.broadcast %cst_12 : f32 to vector<2x64xf32>
    %23 = arith.addf %21, %22 : vector<2x64xf32>
    %24 = vector.extract_strided_slice %13 {offsets = [0, 128], sizes = [2, 64], strides = [1, 1]} : vector<2x256xf32> to vector<2x64xf32>
    %25 = vector.extract_strided_slice %13 {offsets = [0, 192], sizes = [2, 64], strides = [1, 1]} : vector<2x256xf32> to vector<2x64xf32>
    %cst_13 = arith.constant 5.000000e-01 : f32
    %26 = vector.broadcast %cst_13 : f32 to vector<2x64xf32>
    %27 = arith.mulf %26, %25 : vector<2x64xf32>
    %cst_14 = arith.constant 5.000000e-01 : f32
    %28 = vector.broadcast %cst_14 : f32 to vector<2x64xf32>
    %29 = arith.addf %27, %28 : vector<2x64xf32>
    %30 = arith.mulf %23, %8 : vector<2x64xf32>
    %31 = arith.mulf %18, %24 : vector<2x64xf32>
    %32 = arith.addf %30, %31 : vector<2x64xf32>
    %33 = math.tanh %32 : vector<2x64xf32>
    %34 = arith.mulf %29, %33 : vector<2x64xf32>
    %c0_15 = arith.constant 0 : index
    %c0_16 = arith.constant 0 : index
    %c0_17 = arith.constant 0 : index
    %35 = vector.load %arg3[%c0_15, %c0_16, %c0_17] : memref<2x8x64xf32, #tpu.memory_space<vmem>>, vector<2x1x64xf32>
    %36 = vector.shape_cast %35 : vector<2x1x64xf32> to vector<2x64xf32>
    %37 = vector.shape_cast %34 : vector<2x64xf32> to vector<2x1x64xf32>
    tpu.vector_store %arg3[%c0_15, %c0_16, %c0_17], %37 {strides = array<i32>} : memref<2x8x64xf32, #tpu.memory_space<vmem>>, vector<2x1x64xf32>,
    %38 = vector.extract_strided_slice %6 {offsets = [2, 0], sizes = [2, 256], strides = [1, 1]} : vector<16x256xf32> to vector<2x256xf32>
    %39 = arith.truncf %34 : vector<2x64xf32> to vector<2x64xbf16>
    %cst_18 = arith.constant dense<0.000000e+00> : vector<2x256xf32>
    %40 = tpu.matmul %39, %1, %cst_18 {dimension_numbers = #tpu.dot_dimension_numbers<[1], [0], [0], [1], [0, 0, 1, 1], [], []>} : vector<2x64xbf16>, vector<64x256xbf16>, vector<2x256xf32> -> vector<2x256xf32>
    %41 = arith.addf %38, %40 : vector<2x256xf32>
    %42 = math.tanh %41 : vector<2x256xf32>
    %43 = vector.extract_strided_slice %42 {offsets = [0, 0], sizes = [2, 64], strides = [1, 1]} : vector<2x256xf32> to vector<2x64xf32>
    %cst_19 = arith.constant 5.000000e-01 : f32
    %44 = vector.broadcast %cst_19 : f32 to vector<2x64xf32>
    %45 = arith.mulf %44, %43 : vector<2x64xf32>
    %cst_20 = arith.constant 5.000000e-01 : f32
    %46 = vector.broadcast %cst_20 : f32 to vector<2x64xf32>
    %47 = arith.addf %45, %46 : vector<2x64xf32>
    %48 = vector.extract_strided_slice %42 {offsets = [0, 64], sizes = [2, 64], strides = [1, 1]} : vector<2x256xf32> to vector<2x64xf32>
    %cst_21 = arith.constant 5.000000e-01 : f32
    %49 = vector.broadcast %cst_21 : f32 to vector<2x64xf32>
    %50 = arith.mulf %49, %48 : vector<2x64xf32>
    %cst_22 = arith.constant 5.000000e-01 : f32
    %51 = vector.broadcast %cst_22 : f32 to vector<2x64xf32>
    %52 = arith.addf %50, %51 : vector<2x64xf32>
    %53 = vector.extract_strided_slice %42 {offsets = [0, 128], sizes = [2, 64], strides = [1, 1]} : vector<2x256xf32> to vector<2x64xf32>
    %54 = vector.extract_strided_slice %42 {offsets = [0, 192], sizes = [2, 64], strides = [1, 1]} : vector<2x256xf32> to vector<2x64xf32>
    %cst_23 = arith.constant 5.000000e-01 : f32
    %55 = vector.broadcast %cst_23 : f32 to vector<2x64xf32>
    %56 = arith.mulf %55, %54 : vector<2x64xf32>
    %cst_24 = arith.constant 5.000000e-01 : f32
    %57 = vector.broadcast %cst_24 : f32 to vector<2x64xf32>
    %58 = arith.addf %56, %57 : vector<2x64xf32>
    %59 = arith.mulf %52, %32 : vector<2x64xf32>
    %60 = arith.mulf %47, %53 : vector<2x64xf32>
    %61 = arith.addf %59, %60 : vector<2x64xf32>
    %62 = math.tanh %61 : vector<2x64xf32>
    %63 = arith.mulf %58, %62 : vector<2x64xf32>
    %c0_25 = arith.constant 0 : index
    %c1 = arith.constant 1 : index
    %c0_26 = arith.constant 0 : index
    %64 = vector.load %arg3[%c0_25, %c1, %c0_26] : memref<2x8x64xf32, #tpu.memory_space<vmem>>, vector<2x1x64xf32>
    %65 = vector.shape_cast %64 : vector<2x1x64xf32> to vector<2x64xf32>
    %66 = vector.shape_cast %63 : vector<2x64xf32> to vector<2x1x64xf32>
    tpu.vector_store %arg3[%c0_25, %c1, %c0_26], %66 {strides = array<i32>} : memref<2x8x64xf32, #tpu.memory_space<vmem>>, vector<2x1x64xf32>,
    %67 = vector.extract_strided_slice %6 {offsets = [4, 0], sizes = [2, 256], strides = [1, 1]} : vector<16x256xf32> to vector<2x256xf32>
    %68 = arith.truncf %63 : vector<2x64xf32> to vector<2x64xbf16>
    %cst_27 = arith.constant dense<0.000000e+00> : vector<2x256xf32>
    %69 = tpu.matmul %68, %1, %cst_27 {dimension_numbers = #tpu.dot_dimension_numbers<[1], [0], [0], [1], [0, 0, 1, 1], [], []>} : vector<2x64xbf16>, vector<64x256xbf16>, vector<2x256xf32> -> vector<2x256xf32>
    %70 = arith.addf %67, %69 : vector<2x256xf32>
    %71 = math.tanh %70 : vector<2x256xf32>
    %72 = vector.extract_strided_slice %71 {offsets = [0, 0], sizes = [2, 64], strides = [1, 1]} : vector<2x256xf32> to vector<2x64xf32>
    %cst_28 = arith.constant 5.000000e-01 : f32
    %73 = vector.broadcast %cst_28 : f32 to vector<2x64xf32>
    %74 = arith.mulf %73, %72 : vector<2x64xf32>
    %cst_29 = arith.constant 5.000000e-01 : f32
    %75 = vector.broadcast %cst_29 : f32 to vector<2x64xf32>
    %76 = arith.addf %74, %75 : vector<2x64xf32>
    %77 = vector.extract_strided_slice %71 {offsets = [0, 64], sizes = [2, 64], strides = [1, 1]} : vector<2x256xf32> to vector<2x64xf32>
    %cst_30 = arith.constant 5.000000e-01 : f32
    %78 = vector.broadcast %cst_30 : f32 to vector<2x64xf32>
    %79 = arith.mulf %78, %77 : vector<2x64xf32>
    %cst_31 = arith.constant 5.000000e-01 : f32
    %80 = vector.broadcast %cst_31 : f32 to vector<2x64xf32>
    %81 = arith.addf %79, %80 : vector<2x64xf32>
    %82 = vector.extract_strided_slice %71 {offsets = [0, 128], sizes = [2, 64], strides = [1, 1]} : vector<2x256xf32> to vector<2x64xf32>
    %83 = vector.extract_strided_slice %71 {offsets = [0, 192], sizes = [2, 64], strides = [1, 1]} : vector<2x256xf32> to vector<2x64xf32>
    %cst_32 = arith.constant 5.000000e-01 : f32
    %84 = vector.broadcast %cst_32 : f32 to vector<2x64xf32>
    %85 = arith.mulf %84, %83 : vector<2x64xf32>
    %cst_33 = arith.constant 5.000000e-01 : f32
    %86 = vector.broadcast %cst_33 : f32 to vector<2x64xf32>
    %87 = arith.addf %85, %86 : vector<2x64xf32>
    %88 = arith.mulf %81, %61 : vector<2x64xf32>
    %89 = arith.mulf %76, %82 : vector<2x64xf32>
    %90 = arith.addf %88, %89 : vector<2x64xf32>
    %91 = math.tanh %90 : vector<2x64xf32>
    %92 = arith.mulf %87, %91 : vector<2x64xf32>
    %c0_34 = arith.constant 0 : index
    %c2 = arith.constant 2 : index
    %c0_35 = arith.constant 0 : index
    %93 = vector.load %arg3[%c0_34, %c2, %c0_35] : memref<2x8x64xf32, #tpu.memory_space<vmem>>, vector<2x1x64xf32>
    %94 = vector.shape_cast %93 : vector<2x1x64xf32> to vector<2x64xf32>
    %95 = vector.shape_cast %92 : vector<2x64xf32> to vector<2x1x64xf32>
    tpu.vector_store %arg3[%c0_34, %c2, %c0_35], %95 {strides = array<i32>} : memref<2x8x64xf32, #tpu.memory_space<vmem>>, vector<2x1x64xf32>,
    %96 = vector.extract_strided_slice %6 {offsets = [6, 0], sizes = [2, 256], strides = [1, 1]} : vector<16x256xf32> to vector<2x256xf32>
    %97 = arith.truncf %92 : vector<2x64xf32> to vector<2x64xbf16>
    %cst_36 = arith.constant dense<0.000000e+00> : vector<2x256xf32>
    %98 = tpu.matmul %97, %1, %cst_36 {dimension_numbers = #tpu.dot_dimension_numbers<[1], [0], [0], [1], [0, 0, 1, 1], [], []>} : vector<2x64xbf16>, vector<64x256xbf16>, vector<2x256xf32> -> vector<2x256xf32>
    %99 = arith.addf %96, %98 : vector<2x256xf32>
    %100 = math.tanh %99 : vector<2x256xf32>
    %101 = vector.extract_strided_slice %100 {offsets = [0, 0], sizes = [2, 64], strides = [1, 1]} : vector<2x256xf32> to vector<2x64xf32>
    %cst_37 = arith.constant 5.000000e-01 : f32
    %102 = vector.broadcast %cst_37 : f32 to vector<2x64xf32>
    %103 = arith.mulf %102, %101 : vector<2x64xf32>
    %cst_38 = arith.constant 5.000000e-01 : f32
    %104 = vector.broadcast %cst_38 : f32 to vector<2x64xf32>
    %105 = arith.addf %103, %104 : vector<2x64xf32>
    %106 = vector.extract_strided_slice %100 {offsets = [0, 64], sizes = [2, 64], strides = [1, 1]} : vector<2x256xf32> to vector<2x64xf32>
    %cst_39 = arith.constant 5.000000e-01 : f32
    %107 = vector.broadcast %cst_39 : f32 to vector<2x64xf32>
    %108 = arith.mulf %107, %106 : vector<2x64xf32>
    %cst_40 = arith.constant 5.000000e-01 : f32
    %109 = vector.broadcast %cst_40 : f32 to vector<2x64xf32>
    %110 = arith.addf %108, %109 : vector<2x64xf32>
    %111 = vector.extract_strided_slice %100 {offsets = [0, 128], sizes = [2, 64], strides = [1, 1]} : vector<2x256xf32> to vector<2x64xf32>
    %112 = vector.extract_strided_slice %100 {offsets = [0, 192], sizes = [2, 64], strides = [1, 1]} : vector<2x256xf32> to vector<2x64xf32>
    %cst_41 = arith.constant 5.000000e-01 : f32
    %113 = vector.broadcast %cst_41 : f32 to vector<2x64xf32>
    %114 = arith.mulf %113, %112 : vector<2x64xf32>
    %cst_42 = arith.constant 5.000000e-01 : f32
    %115 = vector.broadcast %cst_42 : f32 to vector<2x64xf32>
    %116 = arith.addf %114, %115 : vector<2x64xf32>
    %117 = arith.mulf %110, %90 : vector<2x64xf32>
    %118 = arith.mulf %105, %111 : vector<2x64xf32>
    %119 = arith.addf %117, %118 : vector<2x64xf32>
    %120 = math.tanh %119 : vector<2x64xf32>
    %121 = arith.mulf %116, %120 : vector<2x64xf32>
    %c0_43 = arith.constant 0 : index
    %c3 = arith.constant 3 : index
    %c0_44 = arith.constant 0 : index
    %122 = vector.load %arg3[%c0_43, %c3, %c0_44] : memref<2x8x64xf32, #tpu.memory_space<vmem>>, vector<2x1x64xf32>
    %123 = vector.shape_cast %122 : vector<2x1x64xf32> to vector<2x64xf32>
    %124 = vector.shape_cast %121 : vector<2x64xf32> to vector<2x1x64xf32>
    tpu.vector_store %arg3[%c0_43, %c3, %c0_44], %124 {strides = array<i32>} : memref<2x8x64xf32, #tpu.memory_space<vmem>>, vector<2x1x64xf32>,
    %125 = vector.extract_strided_slice %6 {offsets = [8, 0], sizes = [2, 256], strides = [1, 1]} : vector<16x256xf32> to vector<2x256xf32>
    %126 = arith.truncf %121 : vector<2x64xf32> to vector<2x64xbf16>
    %cst_45 = arith.constant dense<0.000000e+00> : vector<2x256xf32>
    %127 = tpu.matmul %126, %1, %cst_45 {dimension_numbers = #tpu.dot_dimension_numbers<[1], [0], [0], [1], [0, 0, 1, 1], [], []>} : vector<2x64xbf16>, vector<64x256xbf16>, vector<2x256xf32> -> vector<2x256xf32>
    %128 = arith.addf %125, %127 : vector<2x256xf32>
    %129 = math.tanh %128 : vector<2x256xf32>
    %130 = vector.extract_strided_slice %129 {offsets = [0, 0], sizes = [2, 64], strides = [1, 1]} : vector<2x256xf32> to vector<2x64xf32>
    %cst_46 = arith.constant 5.000000e-01 : f32
    %131 = vector.broadcast %cst_46 : f32 to vector<2x64xf32>
    %132 = arith.mulf %131, %130 : vector<2x64xf32>
    %cst_47 = arith.constant 5.000000e-01 : f32
    %133 = vector.broadcast %cst_47 : f32 to vector<2x64xf32>
    %134 = arith.addf %132, %133 : vector<2x64xf32>
    %135 = vector.extract_strided_slice %129 {offsets = [0, 64], sizes = [2, 64], strides = [1, 1]} : vector<2x256xf32> to vector<2x64xf32>
    %cst_48 = arith.constant 5.000000e-01 : f32
    %136 = vector.broadcast %cst_48 : f32 to vector<2x64xf32>
    %137 = arith.mulf %136, %135 : vector<2x64xf32>
    %cst_49 = arith.constant 5.000000e-01 : f32
    %138 = vector.broadcast %cst_49 : f32 to vector<2x64xf32>
    %139 = arith.addf %137, %138 : vector<2x64xf32>
    %140 = vector.extract_strided_slice %129 {offsets = [0, 128], sizes = [2, 64], strides = [1, 1]} : vector<2x256xf32> to vector<2x64xf32>
    %141 = vector.extract_strided_slice %129 {offsets = [0, 192], sizes = [2, 64], strides = [1, 1]} : vector<2x256xf32> to vector<2x64xf32>
    %cst_50 = arith.constant 5.000000e-01 : f32
    %142 = vector.broadcast %cst_50 : f32 to vector<2x64xf32>
    %143 = arith.mulf %142, %141 : vector<2x64xf32>
    %cst_51 = arith.constant 5.000000e-01 : f32
    %144 = vector.broadcast %cst_51 : f32 to vector<2x64xf32>
    %145 = arith.addf %143, %144 : vector<2x64xf32>
    %146 = arith.mulf %139, %119 : vector<2x64xf32>
    %147 = arith.mulf %134, %140 : vector<2x64xf32>
    %148 = arith.addf %146, %147 : vector<2x64xf32>
    %149 = math.tanh %148 : vector<2x64xf32>
    %150 = arith.mulf %145, %149 : vector<2x64xf32>
    %c0_52 = arith.constant 0 : index
    %c4 = arith.constant 4 : index
    %c0_53 = arith.constant 0 : index
    %151 = vector.load %arg3[%c0_52, %c4, %c0_53] : memref<2x8x64xf32, #tpu.memory_space<vmem>>, vector<2x1x64xf32>
    %152 = vector.shape_cast %151 : vector<2x1x64xf32> to vector<2x64xf32>
    %153 = vector.shape_cast %150 : vector<2x64xf32> to vector<2x1x64xf32>
    tpu.vector_store %arg3[%c0_52, %c4, %c0_53], %153 {strides = array<i32>} : memref<2x8x64xf32, #tpu.memory_space<vmem>>, vector<2x1x64xf32>,
    %154 = vector.extract_strided_slice %6 {offsets = [10, 0], sizes = [2, 256], strides = [1, 1]} : vector<16x256xf32> to vector<2x256xf32>
    %155 = arith.truncf %150 : vector<2x64xf32> to vector<2x64xbf16>
    %cst_54 = arith.constant dense<0.000000e+00> : vector<2x256xf32>
    %156 = tpu.matmul %155, %1, %cst_54 {dimension_numbers = #tpu.dot_dimension_numbers<[1], [0], [0], [1], [0, 0, 1, 1], [], []>} : vector<2x64xbf16>, vector<64x256xbf16>, vector<2x256xf32> -> vector<2x256xf32>
    %157 = arith.addf %154, %156 : vector<2x256xf32>
    %158 = math.tanh %157 : vector<2x256xf32>
    %159 = vector.extract_strided_slice %158 {offsets = [0, 0], sizes = [2, 64], strides = [1, 1]} : vector<2x256xf32> to vector<2x64xf32>
    %cst_55 = arith.constant 5.000000e-01 : f32
    %160 = vector.broadcast %cst_55 : f32 to vector<2x64xf32>
    %161 = arith.mulf %160, %159 : vector<2x64xf32>
    %cst_56 = arith.constant 5.000000e-01 : f32
    %162 = vector.broadcast %cst_56 : f32 to vector<2x64xf32>
    %163 = arith.addf %161, %162 : vector<2x64xf32>
    %164 = vector.extract_strided_slice %158 {offsets = [0, 64], sizes = [2, 64], strides = [1, 1]} : vector<2x256xf32> to vector<2x64xf32>
    %cst_57 = arith.constant 5.000000e-01 : f32
    %165 = vector.broadcast %cst_57 : f32 to vector<2x64xf32>
    %166 = arith.mulf %165, %164 : vector<2x64xf32>
    %cst_58 = arith.constant 5.000000e-01 : f32
    %167 = vector.broadcast %cst_58 : f32 to vector<2x64xf32>
    %168 = arith.addf %166, %167 : vector<2x64xf32>
    %169 = vector.extract_strided_slice %158 {offsets = [0, 128], sizes = [2, 64], strides = [1, 1]} : vector<2x256xf32> to vector<2x64xf32>
    %170 = vector.extract_strided_slice %158 {offsets = [0, 192], sizes = [2, 64], strides = [1, 1]} : vector<2x256xf32> to vector<2x64xf32>
    %cst_59 = arith.constant 5.000000e-01 : f32
    %171 = vector.broadcast %cst_59 : f32 to vector<2x64xf32>
    %172 = arith.mulf %171, %170 : vector<2x64xf32>
    %cst_60 = arith.constant 5.000000e-01 : f32
    %173 = vector.broadcast %cst_60 : f32 to vector<2x64xf32>
    %174 = arith.addf %172, %173 : vector<2x64xf32>
    %175 = arith.mulf %168, %148 : vector<2x64xf32>
    %176 = arith.mulf %163, %169 : vector<2x64xf32>
    %177 = arith.addf %175, %176 : vector<2x64xf32>
    %178 = math.tanh %177 : vector<2x64xf32>
    %179 = arith.mulf %174, %178 : vector<2x64xf32>
    %c0_61 = arith.constant 0 : index
    %c5 = arith.constant 5 : index
    %c0_62 = arith.constant 0 : index
    %180 = vector.load %arg3[%c0_61, %c5, %c0_62] : memref<2x8x64xf32, #tpu.memory_space<vmem>>, vector<2x1x64xf32>
    %181 = vector.shape_cast %180 : vector<2x1x64xf32> to vector<2x64xf32>
    %182 = vector.shape_cast %179 : vector<2x64xf32> to vector<2x1x64xf32>
    tpu.vector_store %arg3[%c0_61, %c5, %c0_62], %182 {strides = array<i32>} : memref<2x8x64xf32, #tpu.memory_space<vmem>>, vector<2x1x64xf32>,
    %183 = vector.extract_strided_slice %6 {offsets = [12, 0], sizes = [2, 256], strides = [1, 1]} : vector<16x256xf32> to vector<2x256xf32>
    %184 = arith.truncf %179 : vector<2x64xf32> to vector<2x64xbf16>
    %cst_63 = arith.constant dense<0.000000e+00> : vector<2x256xf32>
    %185 = tpu.matmul %184, %1, %cst_63 {dimension_numbers = #tpu.dot_dimension_numbers<[1], [0], [0], [1], [0, 0, 1, 1], [], []>} : vector<2x64xbf16>, vector<64x256xbf16>, vector<2x256xf32> -> vector<2x256xf32>
    %186 = arith.addf %183, %185 : vector<2x256xf32>
    %187 = math.tanh %186 : vector<2x256xf32>
    %188 = vector.extract_strided_slice %187 {offsets = [0, 0], sizes = [2, 64], strides = [1, 1]} : vector<2x256xf32> to vector<2x64xf32>
    %cst_64 = arith.constant 5.000000e-01 : f32
    %189 = vector.broadcast %cst_64 : f32 to vector<2x64xf32>
    %190 = arith.mulf %189, %188 : vector<2x64xf32>
    %cst_65 = arith.constant 5.000000e-01 : f32
    %191 = vector.broadcast %cst_65 : f32 to vector<2x64xf32>
    %192 = arith.addf %190, %191 : vector<2x64xf32>
    %193 = vector.extract_strided_slice %187 {offsets = [0, 64], sizes = [2, 64], strides = [1, 1]} : vector<2x256xf32> to vector<2x64xf32>
    %cst_66 = arith.constant 5.000000e-01 : f32
    %194 = vector.broadcast %cst_66 : f32 to vector<2x64xf32>
    %195 = arith.mulf %194, %193 : vector<2x64xf32>
    %cst_67 = arith.constant 5.000000e-01 : f32
    %196 = vector.broadcast %cst_67 : f32 to vector<2x64xf32>
    %197 = arith.addf %195, %196 : vector<2x64xf32>
    %198 = vector.extract_strided_slice %187 {offsets = [0, 128], sizes = [2, 64], strides = [1, 1]} : vector<2x256xf32> to vector<2x64xf32>
    %199 = vector.extract_strided_slice %187 {offsets = [0, 192], sizes = [2, 64], strides = [1, 1]} : vector<2x256xf32> to vector<2x64xf32>
    %cst_68 = arith.constant 5.000000e-01 : f32
    %200 = vector.broadcast %cst_68 : f32 to vector<2x64xf32>
    %201 = arith.mulf %200, %199 : vector<2x64xf32>
    %cst_69 = arith.constant 5.000000e-01 : f32
    %202 = vector.broadcast %cst_69 : f32 to vector<2x64xf32>
    %203 = arith.addf %201, %202 : vector<2x64xf32>
    %204 = arith.mulf %197, %177 : vector<2x64xf32>
    %205 = arith.mulf %192, %198 : vector<2x64xf32>
    %206 = arith.addf %204, %205 : vector<2x64xf32>
    %207 = math.tanh %206 : vector<2x64xf32>
    %208 = arith.mulf %203, %207 : vector<2x64xf32>
    %c0_70 = arith.constant 0 : index
    %c6 = arith.constant 6 : index
    %c0_71 = arith.constant 0 : index
    %209 = vector.load %arg3[%c0_70, %c6, %c0_71] : memref<2x8x64xf32, #tpu.memory_space<vmem>>, vector<2x1x64xf32>
    %210 = vector.shape_cast %209 : vector<2x1x64xf32> to vector<2x64xf32>
    %211 = vector.shape_cast %208 : vector<2x64xf32> to vector<2x1x64xf32>
    tpu.vector_store %arg3[%c0_70, %c6, %c0_71], %211 {strides = array<i32>} : memref<2x8x64xf32, #tpu.memory_space<vmem>>, vector<2x1x64xf32>,
    %212 = vector.extract_strided_slice %6 {offsets = [14, 0], sizes = [2, 256], strides = [1, 1]} : vector<16x256xf32> to vector<2x256xf32>
    %213 = arith.truncf %208 : vector<2x64xf32> to vector<2x64xbf16>
    %cst_72 = arith.constant dense<0.000000e+00> : vector<2x256xf32>
    %214 = tpu.matmul %213, %1, %cst_72 {dimension_numbers = #tpu.dot_dimension_numbers<[1], [0], [0], [1], [0, 0, 1, 1], [], []>} : vector<2x64xbf16>, vector<64x256xbf16>, vector<2x256xf32> -> vector<2x256xf32>
    %215 = arith.addf %212, %214 : vector<2x256xf32>
    %216 = math.tanh %215 : vector<2x256xf32>
    %217 = vector.extract_strided_slice %216 {offsets = [0, 0], sizes = [2, 64], strides = [1, 1]} : vector<2x256xf32> to vector<2x64xf32>
    %cst_73 = arith.constant 5.000000e-01 : f32
    %218 = vector.broadcast %cst_73 : f32 to vector<2x64xf32>
    %219 = arith.mulf %218, %217 : vector<2x64xf32>
    %cst_74 = arith.constant 5.000000e-01 : f32
    %220 = vector.broadcast %cst_74 : f32 to vector<2x64xf32>
    %221 = arith.addf %219, %220 : vector<2x64xf32>
    %222 = vector.extract_strided_slice %216 {offsets = [0, 64], sizes = [2, 64], strides = [1, 1]} : vector<2x256xf32> to vector<2x64xf32>
    %cst_75 = arith.constant 5.000000e-01 : f32
    %223 = vector.broadcast %cst_75 : f32 to vector<2x64xf32>
    %224 = arith.mulf %223, %222 : vector<2x64xf32>
    %cst_76 = arith.constant 5.000000e-01 : f32
    %225 = vector.broadcast %cst_76 : f32 to vector<2x64xf32>
    %226 = arith.addf %224, %225 : vector<2x64xf32>
    %227 = vector.extract_strided_slice %216 {offsets = [0, 128], sizes = [2, 64], strides = [1, 1]} : vector<2x256xf32> to vector<2x64xf32>
    %228 = vector.extract_strided_slice %216 {offsets = [0, 192], sizes = [2, 64], strides = [1, 1]} : vector<2x256xf32> to vector<2x64xf32>
    %cst_77 = arith.constant 5.000000e-01 : f32
    %229 = vector.broadcast %cst_77 : f32 to vector<2x64xf32>
    %230 = arith.mulf %229, %228 : vector<2x64xf32>
    %cst_78 = arith.constant 5.000000e-01 : f32
    %231 = vector.broadcast %cst_78 : f32 to vector<2x64xf32>
    %232 = arith.addf %230, %231 : vector<2x64xf32>
    %233 = arith.mulf %226, %206 : vector<2x64xf32>
    %234 = arith.mulf %221, %227 : vector<2x64xf32>
    %235 = arith.addf %233, %234 : vector<2x64xf32>
    %236 = math.tanh %235 : vector<2x64xf32>
    %237 = arith.mulf %232, %236 : vector<2x64xf32>
    %c0_79 = arith.constant 0 : index
    %c7 = arith.constant 7 : index
    %c0_80 = arith.constant 0 : index
    %238 = vector.load %arg3[%c0_79, %c7, %c0_80] : memref<2x8x64xf32, #tpu.memory_space<vmem>>, vector<2x1x64xf32>
    %239 = vector.shape_cast %238 : vector<2x1x64xf32> to vector<2x64xf32>
    %240 = vector.shape_cast %237 : vector<2x64xf32> to vector<2x1x64xf32>
    tpu.vector_store %arg3[%c0_79, %c7, %c0_80], %240 {strides = array<i32>} : memref<2x8x64xf32, #tpu.memory_space<vmem>>, vector<2x1x64xf32>,
    return
  }
}

</mosaic_0001>

<llo_original>
// kernel: lstm_forward.1
$region0: #{lstm_forward.1}
  #allocation0 [shape = 'u32[]', space=smem, size = 0x4, offset = 0x4, fixed_abs, tag = 'smem constant byte address 0x4 - core index']
  #allocation1 [shape = 'u32[144,128]{1,0:T(1,128)}', space=vmem, size = 0x12000, scoped, tag = 'internal scratch']
  %s0 = inlined_call_operand.vmem [shape: bf16[16,64], index: 0, kind: input, shape index: {}]
  %s1 = inlined_call_operand.hbm [shape: bf16[128,256], index: 1, kind: input, shape index: {}]
  %s2 = inlined_call_operand.vmem [shape: f32[1,256], index: 2, kind: input, shape index: {}]
  %s3 = inlined_call_operand.hbm [shape: f32[2,8,64], index: 3, kind: output, shape index: {}]
  %s4 = sld [smem:[#allocation0]]
  $region26: #{lstm_forward.1} parent=0
    _
  %s6 = ssub.s32 1, %s4
  %s7 = scalar_select 0, %s6, %s4
  $region1: #{lstm_forward.1} parent=0
    #allocation2 [shape = 'u8[65536]{0}', space=vmem, size = 0x10000, scoped, tag = 'input window, operand 1, single buffered']
    #allocation3 [shape = 's32[1]{0}', space=sflag, size = 0x4, scoped, tag = 'scoped memory for lstm_forward.1']
    #allocation4 [shape = 's32[1]{0}', space=sflag, size = 0x4, scoped, tag = 'scoped memory for lstm_forward.1']
    #allocation5 [shape = 'u8[8192]{0}', space=vmem, size = 0x2000, scoped, tag = 'output window, operand 0, single buffered']
    %8 = vsyncpa [#allocation3], 0
    %9 = vsyncpa [#allocation4], 0
    // Predicated region
    $region2: #{lstm_forward.1} parent=1 // pred_check
      _
    $region3: #{lstm_forward.1} parent=1 // pred_check_branch
      %11 = sbr.rel (0) target = $region5
    $region4: #{lstm_forward.1} parent=1 // pred_region
      _
    $region5: #{lstm_forward.1} parent=1 // pred_fallthru
      _
    // Predicated region
    $region6: #{lstm_forward.1} parent=1 // pred_check
      _
    $region7: #{lstm_forward.1} parent=1 // pred_check_branch
      %13 = sbr.rel (0) target = $region9
    $region8: #{lstm_forward.1} parent=1 // pred_region
      %s15 = ssub.s32 2048, 2048
      %16 = vsyncadd [#allocation3], %s15
      %s17 = sshll.u32 [#allocation2], 4
      %s18 = int_to_ptr.vmem [resolvable:$true] %s17
      %23 = dma.hbm_to_vmem [thread:$0]  %s1, 2048, %s18, [#allocation3], 128, 128, 8
    $region9: #{lstm_forward.1} parent=1 // pred_fallthru
      _
    // Predicated region
    $region10: #{lstm_forward.1} parent=1 // pred_check
      _
    $region11: #{lstm_forward.1} parent=1 // pred_check_branch
      %25 = sbr.rel (0) target = $region13
    $region12: #{lstm_forward.1} parent=1 // pred_region
      _
    $region13: #{lstm_forward.1} parent=1 // pred_fallthru
      _
    // Predicated region
    $region14: #{lstm_forward.1} parent=1 // pred_check
      _
    $region15: #{lstm_forward.1} parent=1 // pred_check_branch
      %27 = sbr.rel (0) target = $region17
    $region16: #{lstm_forward.1} parent=1 // pred_region
      %28 = dma.done [#allocation3], 2048
    $region17: #{lstm_forward.1} parent=1 // pred_fallthru
      _
    %v30 = vld [vmem:[#allocation2] sm:$0xff]
    %v31 = vld [vmem:[#allocation2 + $0x8] sm:$0xff]
    %v32 = vld [vmem:[#allocation2 + $0x10] sm:$0xff]
    %v33 = vld [vmem:[#allocation2 + $0x18] sm:$0xff]
    %v34 = vld [vmem:[#allocation2 + $0x20] sm:$0xff]
    %v35 = vld [vmem:[#allocation2 + $0x28] sm:$0xff]
    %v36 = vld [vmem:[#allocation2 + $0x30] sm:$0xff]
    %v37 = vld [vmem:[#allocation2 + $0x38] sm:$0xff]
    %v38 = vld [vmem:[#allocation2 + $0x40] sm:$0xff]
    %v39 = vld [vmem:[#allocation2 + $0x48] sm:$0xff]
    %v40 = vld [vmem:[#allocation2 + $0x50] sm:$0xff]
    %v41 = vld [vmem:[#allocation2 + $0x58] sm:$0xff]
    %v42 = vld [vmem:[#allocation2 + $0x60] sm:$0xff]
    %v43 = vld [vmem:[#allocation2 + $0x68] sm:$0xff]
    %v44 = vld [vmem:[#allocation2 + $0x70] sm:$0xff]
    %v45 = vld [vmem:[#allocation2 + $0x78] sm:$0xff]
    %v46 = vld [vmem:[%s2] sm:$0x3]
    %v47 = vld [vmem:[%s0] sm:$0xf]
    %v48 = vld [vmem:[%s0 + $0x4] sm:$0xf]
    %v50 = vlaneseq
    %v51 = vshrl.u32 %v50, 7
    %v52 = vsub.s32 0, %v51
    %v53 = vrot.slane %v46, %v52
    %v54 = vlaneseq
    %v55 = vshrl.u32 %v54, 7
    %v56 = vsub.s32 1, %v55
    %v57 = vrot.slane %v46, %v56
    %v62 = vunpack.c.l.b16 %v47
    %v63 = vunpack.c.l.b16 %v48
    %v64 = vpack.c.b16 %v63, %v62
    %v73 = vunpack.c.l.b16 %v30
    %v74 = vunpack.c.h.b16 %v30
    %v75 = vunpack.c.l.b16 %v31
    %v76 = vunpack.c.h.b16 %v31
    %v77 = vunpack.c.l.b16 %v32
    %v78 = vunpack.c.h.b16 %v32
    %v79 = vunpack.c.l.b16 %v33
    %v80 = vunpack.c.h.b16 %v33
    %v81 = vunpack.c.l.b16 %v34
    %v82 = vunpack.c.h.b16 %v34
    %v83 = vunpack.c.l.b16 %v35
    %v84 = vunpack.c.h.b16 %v35
    %v85 = vunpack.c.l.b16 %v36
    %v86 = vunpack.c.h.b16 %v36
    %v87 = vunpack.c.l.b16 %v37
    %v88 = vunpack.c.h.b16 %v37
    %v89 = vpack.c.b16 %v75, %v73
    %v90 = vpack.c.b16 %v76, %v74
    %v91 = vpack.c.b16 %v79, %v77
    %v92 = vpack.c.b16 %v80, %v78
    %v93 = vpack.c.b16 %v83, %v81
    %v94 = vpack.c.b16 %v84, %v82
    %v95 = vpack.c.b16 %v87, %v85
    %v96 = vpack.c.b16 %v88, %v86
    %vm105 = vcmask 523264
    %v107 = vsel %vm105, %v64, 0
    %109 = vmatprep.subr.bf16.mxu0 0
    %110 = vmatpush1.bf16.msra.mxu0 0
    %111 = vmatprep.subr.bf16.mxu0 0
    %112 = vmatpush1.bf16.msra.mxu0 0
    %113 = vmatprep.subr.bf16.mxu0 0
    %114 = vmatpush1.bf16.msra.mxu0 0
    %115 = vmatprep.subr.bf16.mxu0 0
    %116 = vmatpush1.bf16.msra.mxu0 0
    %117 = vmatprep.subr.bf16.mxu0 %v96
    %118 = vmatpush1.bf16.msra.mxu0 %v95
    %119 = vmatprep.subr.bf16.mxu0 %v94
    %120 = vmatpush1.bf16.msra.mxu0 %v93
    %121 = vmatprep.subr.bf16.mxu0 %v92
    %122 = vmatpush1.bf16.msra.mxu0 %v91
    %123 = vmatprep.subr.bf16.mxu0 %v90
    %124 = vmatpush1.bf16.msra.mxu0 %v89
    %125 = vmatprep.subr.bf16.mxu0 0
    %126 = vmatpush2.bf16.msra.mxu0 0
    %127 = vmatprep.subr.bf16.mxu0 0
    %128 = vmatpush2.bf16.msra.mxu0 0
    %129 = vmatprep.subr.bf16.mxu0 0
    %130 = vmatpush2.bf16.msra.mxu0 0
    %131 = vmatprep.subr.bf16.mxu0 0
    %132 = vmatpush2.bf16.msra.mxu0 0
    %133 = vmatprep.subr.bf16.mxu0 0
    %134 = vmatpush2.bf16.msra.mxu0 0
    %135 = vmatprep.subr.bf16.mxu0 0
    %136 = vmatpush2.bf16.msra.mxu0 0
    %137 = vmatprep.subr.bf16.mxu0 0
    %138 = vmatpush2.bf16.msra.mxu0 0
    %139 = vmatprep.subr.bf16.mxu0 0
    %140 = vmatpush2.bf16.msra.mxu0 0
    %141 = vmatprep.mubr.bf16.mxu0 0
    %142 = vmatmul.mubr.bf16.gmra.mxu0 %v107
    %v143 = vpop.f32.mrf.mxu0
    %v144 = vadd.f32 %v53, %v143
    %v145 = vpop.f32.mrf.mxu0
    %v146 = vadd.f32 %v57, %v145
    %v147 = vpop.f32.mrf.mxu0
    %v148 = vadd.f32 %v53, %v147
    %v149 = vpop.f32.mrf.mxu0
    %v150 = vadd.f32 %v57, %v149
    %151 = vdwg.mxu0
    %v160 = vunpack.c.l.b16 %v38
    %v161 = vunpack.c.h.b16 %v38
    %v162 = vunpack.c.l.b16 %v39
    %v163 = vunpack.c.h.b16 %v39
    %v164 = vunpack.c.l.b16 %v40
    %v165 = vunpack.c.h.b16 %v40
    %v166 = vunpack.c.l.b16 %v41
    %v167 = vunpack.c.h.b16 %v41
    %v168 = vunpack.c.l.b16 %v42
    %v169 = vunpack.c.h.b16 %v42
    %v170 = vunpack.c.l.b16 %v43
    %v171 = vunpack.c.h.b16 %v43
    %v172 = vunpack.c.l.b16 %v44
    %v173 = vunpack.c.h.b16 %v44
    %v174 = vunpack.c.l.b16 %v45
    %v175 = vunpack.c.h.b16 %v45
    %v176 = vpack.c.b16 %v162, %v160
    %v177 = vpack.c.b16 %v163, %v161
    %v178 = vpack.c.b16 %v166, %v164
    %v179 = vpack.c.b16 %v167, %v165
    %v180 = vpack.c.b16 %v170, %v168
    %v181 = vpack.c.b16 %v171, %v169
    %v182 = vpack.c.b16 %v174, %v172
    %v183 = vpack.c.b16 %v175, %v173
    %v193 = vsel %vm105, 0, 0
    %195 = vmatprep.subr.bf16.mxu0 0
    %196 = vmatpush1.bf16.msra.mxu0 0
    %197 = vmatprep.subr.bf16.mxu0 0
    %198 = vmatpush1.bf16.msra.mxu0 0
    %199 = vmatprep.subr.bf16.mxu0 0
    %200 = vmatpush1.bf16.msra.mxu0 0
    %201 = vmatprep.subr.bf16.mxu0 0
    %202 = vmatpush1.bf16.msra.mxu0 0
    %203 = vmatprep.subr.bf16.mxu0 %v183
    %204 = vmatpush1.bf16.msra.mxu0 %v182
    %205 = vmatprep.subr.bf16.mxu0 %v181
    %206 = vmatpush1.bf16.msra.mxu0 %v180
    %207 = vmatprep.subr.bf16.mxu0 %v179
    %208 = vmatpush1.bf16.msra.mxu0 %v178
    %209 = vmatprep.subr.bf16.mxu0 %v177
    %210 = vmatpush1.bf16.msra.mxu0 %v176
    %211 = vmatprep.subr.bf16.mxu0 0
    %212 = vmatpush2.bf16.msra.mxu0 0
    %213 = vmatprep.subr.bf16.mxu0 0
    %214 = vmatpush2.bf16.msra.mxu0 0
    %215 = vmatprep.subr.bf16.mxu0 0
    %216 = vmatpush2.bf16.msra.mxu0 0
    %217 = vmatprep.subr.bf16.mxu0 0
    %218 = vmatpush2.bf16.msra.mxu0 0
    %219 = vmatprep.subr.bf16.mxu0 0
    %220 = vmatpush2.bf16.msra.mxu0 0
    %221 = vmatprep.subr.bf16.mxu0 0
    %222 = vmatpush2.bf16.msra.mxu0 0
    %223 = vmatprep.subr.bf16.mxu0 0
    %224 = vmatpush2.bf16.msra.mxu0 0
    %225 = vmatprep.subr.bf16.mxu0 0
    %226 = vmatpush2.bf16.msra.mxu0 0
    %227 = vmatprep.mubr.bf16.mxu0 0
    %228 = vmatmul.mubr.bf16.gmra.mxu0 %v193
    %v229 = vpop.f32.mrf.mxu0
    %v230 = vadd.f32 0.0, %v229
    %v231 = vpop.f32.mrf.mxu0
    %v232 = vadd.f32 0.0, %v231
    %v233 = vpop.f32.mrf.mxu0
    %v234 = vpop.f32.mrf.mxu0
    %235 = vdwg.mxu0
    %v236 = vadd.f32 %v144, %v230
    %v237 = vadd.f32 %v146, %v232
    %v238 = vtanh.pop %v236
    %v239 = vtanh.pop %v237
    %v240 = vmul.f32 %v238, 0.5
    %v241 = vadd.f32 %v240, 0.5
    %v242 = vmul.f32 %v239, 0.5
    %v243 = vadd.f32 %v242, 0.5
    %v244 = vmul.f32 %v241, 0.0
    %v245 = vmul.f32 %v241, %v239
    %247 = vrot.lane.b32.xlu0 %v245, 64
    %v248 = vpop.permute.xlu0 %247
    %v250 = vadd.f32 %v244, %v248
    %v251 = vtanh.pop %v250
    %v252 = vmul.f32 %v243, %v251
    %v255 = vunpack.c.l.s4 1966171168
    %v256 = vunpack.c.0.s8 %v255
    %v257 = vlaneseq
    %v258 = vshrl.u32 %v257, 7
    %v259 = vsub.s32 %v256, %v258
    %v260 = vrot.slane %v252, %v259
    %v261 = vcombine.high %v260, %v260
    %v263 = vunpack.c.l.s4 1966171168
    %v264 = vunpack.c.0.s8 %v263
    %v265 = vlaneseq
    %v266 = vshrl.u32 %v265, 7
    %v267 = vsub.s32 %v264, %v266
    %v268 = vrot.slane %v260, %v267
    %v270 = vunpack.c.l.s4 1966171168
    %v271 = vunpack.c.0.s8 %v270
    %v272 = vlaneseq
    %v273 = vshrl.u32 %v272, 7
    %v274 = vsub.s32 %v271, %v273
    %v275 = vrot.slane %v261, %v274
    %v276 = vlaneseq
    %v277 = vshrl.u32 %v276, 7
    %v278 = vsub.s32 0, %v277
    %v279 = vrot.slane %v268, %v278
    %v280 = vlaneseq
    %v281 = vshrl.u32 %v280, 7
    %v282 = vsub.s32 0, %v281
    %v283 = vrot.slane %v275, %v282
    %284 = vrot.lane.b32.xlu0 %v279, 64
    %v285 = vpop.permute.xlu0 %284
    %286 = vrot.lane.b32.xlu0 %v283, 64
    %v287 = vpop.permute.xlu0 %286
    %vm290 = vcmask 516096
    %291 = vst.msk [vmem:[#allocation5] sm:$0x1] %vm290, %v285
    %292 = vst.msk [vmem:[#allocation5 + $0x8] sm:$0x1] %vm290, %v287
    %v293 = vpack.c.bf16 %v252, %v252
    %295 = vrot.lane.b32.xlu0 %v293, 64
    %v296 = vpop.permute.xlu0 %295
    %v298 = vsel %vm105, %v296, 0
    %300 = vmatprep.subr.bf16.mxu0 0
    %301 = vmatpush1.bf16.msra.mxu0 0
    %302 = vmatprep.subr.bf16.mxu0 0
    %303 = vmatpush1.bf16.msra.mxu0 0
    %304 = vmatprep.subr.bf16.mxu0 0
    %305 = vmatpush1.bf16.msra.mxu0 0
    %306 = vmatprep.subr.bf16.mxu0 0
    %307 = vmatpush1.bf16.msra.mxu0 0
    %308 = vmatprep.subr.bf16.mxu0 %v183
    %309 = vmatpush1.bf16.msra.mxu0 %v182
    %310 = vmatprep.subr.bf16.mxu0 %v181
    %311 = vmatpush1.bf16.msra.mxu0 %v180
    %312 = vmatprep.subr.bf16.mxu0 %v179
    %313 = vmatpush1.bf16.msra.mxu0 %v178
    %314 = vmatprep.subr.bf16.mxu0 %v177
    %315 = vmatpush1.bf16.msra.mxu0 %v176
    %316 = vmatprep.subr.bf16.mxu0 0
    %317 = vmatpush2.bf16.msra.mxu0 0
    %318 = vmatprep.subr.bf16.mxu0 0
    %319 = vmatpush2.bf16.msra.mxu0 0
    %320 = vmatprep.subr.bf16.mxu0 0
    %321 = vmatpush2.bf16.msra.mxu0 0
    %322 = vmatprep.subr.bf16.mxu0 0
    %323 = vmatpush2.bf16.msra.mxu0 0
    %324 = vmatprep.subr.bf16.mxu0 0
    %325 = vmatpush2.bf16.msra.mxu0 0
    %326 = vmatprep.subr.bf16.mxu0 0
    %327 = vmatpush2.bf16.msra.mxu0 0
    %328 = vmatprep.subr.bf16.mxu0 0
    %329 = vmatpush2.bf16.msra.mxu0 0
    %330 = vmatprep.subr.bf16.mxu0 0
    %331 = vmatpush2.bf16.msra.mxu0 0
    %332 = vmatprep.mubr.bf16.mxu0 0
    %333 = vmatmul.mubr.bf16.gmra.mxu0 %v298
    %v334 = vpop.f32.mrf.mxu0
    %v335 = vadd.f32 0.0, %v334
    %v336 = vpop.f32.mrf.mxu0
    %v337 = vadd.f32 0.0, %v336
    %v338 = vpop.f32.mrf.mxu0
    %v339 = vpop.f32.mrf.mxu0
    %340 = vdwg.mxu0
    %v343 = vrot.slane %v335, 6
    %v344 = vrot.slane %v337, 6
    %v347 = vadd.f32 %v144, %v343
    %v348 = vadd.f32 %v146, %v344
    %v349 = vtanh.pop %v347
    %v350 = vtanh.pop %v348
    %v351 = vmul.f32 %v349, 0.5
    %v352 = vadd.f32 %v351, 0.5
    %v353 = vmul.f32 %v350, 0.5
    %v354 = vadd.f32 %v353, 0.5
    %v356 = vrot.slane %v250, 6
    %v358 = vmul.f32 %v352, %v356
    %v359 = vmul.f32 %v352, %v350
    %361 = vrot.lane.b32.xlu0 %v359, 64
    %v362 = vpop.permute.xlu0 %361
    %v364 = vadd.f32 %v358, %v362
    %v365 = vtanh.pop %v364
    %v366 = vmul.f32 %v354, %v365
    %v369 = vunpack.c.l.s4 1966171168
    %v370 = vunpack.c.0.s8 %v369
    %v371 = vlaneseq
    %v372 = vshrl.u32 %v371, 7
    %v373 = vsub.s32 %v370, %v372
    %v374 = vrot.slane %v366, %v373
    %v375 = vcombine.high %v374, %v374
    %v377 = vunpack.c.l.s4 1966171168
    %v378 = vunpack.c.0.s8 %v377
    %v379 = vlaneseq
    %v380 = vshrl.u32 %v379, 7
    %v381 = vsub.s32 %v378, %v380
    %v382 = vrot.slane %v374, %v381
    %v384 = vunpack.c.l.s4 1966171168
    %v385 = vunpack.c.0.s8 %v384
    %v386 = vlaneseq
    %v387 = vshrl.u32 %v386, 7
    %v388 = vsub.s32 %v385, %v387
    %v389 = vrot.slane %v375, %v388
    %v390 = vcombine.high %v382, %v382
    %v391 = vcombine.high %v389, %v389
    %v392 = vlaneseq
    %v393 = vshrl.u32 %v392, 7
    %v394 = vsub.s32 0, %v393
    %v395 = vrot.slane %v390, %v394
    %v396 = vlaneseq
    %v397 = vshrl.u32 %v396, 7
    %v398 = vsub.s32 0, %v397
    %v399 = vrot.slane %v391, %v398
    %400 = vrot.lane.b32.xlu0 %v395, 64
    %v401 = vpop.permute.xlu0 %400
    %402 = vrot.lane.b32.xlu0 %v399, 64
    %v403 = vpop.permute.xlu0 %402
    %406 = vst.msk [vmem:[#allocation5 + $0x1] sm:$0x1] %vm290, %v401
    %407 = vst.msk [vmem:[#allocation5 + $0x9] sm:$0x1] %vm290, %v403
    %v408 = vpack.c.bf16 %v366, %v366
    %v410 = vrot.slane %v408, 1
    %411 = vrot.lane.b32.xlu0 %v410, 64
    %v412 = vpop.permute.xlu0 %411
    %v414 = vsel %vm105, %v412, 0
    %416 = vmatprep.subr.bf16.mxu0 0
    %417 = vmatpush1.bf16.msra.mxu0 0
    %418 = vmatprep.subr.bf16.mxu0 0
    %419 = vmatpush1.bf16.msra.mxu0 0
    %420 = vmatprep.subr.bf16.mxu0 0
    %421 = vmatpush1.bf16.msra.mxu0 0
    %422 = vmatprep.subr.bf16.mxu0 0
    %423 = vmatpush1.bf16.msra.mxu0 0
    %424 = vmatprep.subr.bf16.mxu0 %v183
    %425 = vmatpush1.bf16.msra.mxu0 %v182
    %426 = vmatprep.subr.bf16.mxu0 %v181
    %427 = vmatpush1.bf16.msra.mxu0 %v180
    %428 = vmatprep.subr.bf16.mxu0 %v179
    %429 = vmatpush1.bf16.msra.mxu0 %v178
    %430 = vmatprep.subr.bf16.mxu0 %v177
    %431 = vmatpush1.bf16.msra.mxu0 %v176
    %432 = vmatprep.subr.bf16.mxu0 0
    %433 = vmatpush2.bf16.msra.mxu0 0
    %434 = vmatprep.subr.bf16.mxu0 0
    %435 = vmatpush2.bf16.msra.mxu0 0
    %436 = vmatprep.subr.bf16.mxu0 0
    %437 = vmatpush2.bf16.msra.mxu0 0
    %438 = vmatprep.subr.bf16.mxu0 0
    %439 = vmatpush2.bf16.msra.mxu0 0
    %440 = vmatprep.subr.bf16.mxu0 0
    %441 = vmatpush2.bf16.msra.mxu0 0
    %442 = vmatprep.subr.bf16.mxu0 0
    %443 = vmatpush2.bf16.msra.mxu0 0
    %444 = vmatprep.subr.bf16.mxu0 0
    %445 = vmatpush2.bf16.msra.mxu0 0
    %446 = vmatprep.subr.bf16.mxu0 0
    %447 = vmatpush2.bf16.msra.mxu0 0
    %448 = vmatprep.mubr.bf16.mxu0 0
    %449 = vmatmul.mubr.bf16.gmra.mxu0 %v414
    %v450 = vpop.f32.mrf.mxu0
    %v451 = vadd.f32 0.0, %v450
    %v452 = vpop.f32.mrf.mxu0
    %v453 = vadd.f32 0.0, %v452
    %v454 = vpop.f32.mrf.mxu0
    %v455 = vpop.f32.mrf.mxu0
    %456 = vdwg.mxu0
    %v459 = vrot.slane %v451, 4
    %v460 = vrot.slane %v453, 4
    %v463 = vadd.f32 %v144, %v459
    %v464 = vadd.f32 %v146, %v460
    %v465 = vtanh.pop %v463
    %v466 = vtanh.pop %v464
    %v467 = vmul.f32 %v465, 0.5
    %v468 = vadd.f32 %v467, 0.5
    %v469 = vmul.f32 %v466, 0.5
    %v470 = vadd.f32 %v469, 0.5
    %v472 = vrot.slane %v364, 6
    %v474 = vmul.f32 %v468, %v472
    %v475 = vmul.f32 %v468, %v466
    %477 = vrot.lane.b32.xlu0 %v475, 64
    %v478 = vpop.permute.xlu0 %477
    %v480 = vadd.f32 %v474, %v478
    %v481 = vtanh.pop %v480
    %v482 = vmul.f32 %v470, %v481
    %v484 = vcombine.high %v482, %v482
    %v486 = vunpack.c.l.s4 1966171168
    %v487 = vunpack.c.0.s8 %v486
    %v488 = vlaneseq
    %v489 = vshrl.u32 %v488, 7
    %v490 = vsub.s32 %v487, %v489
    %v491 = vrot.slane %v484, %v490
    %v492 = vcombine.high %v491, %v491
    %v494 = vunpack.c.l.s4 1966171168
    %v495 = vunpack.c.0.s8 %v494
    %v496 = vlaneseq
    %v497 = vshrl.u32 %v496, 7
    %v498 = vsub.s32 %v495, %v497
    %v499 = vrot.slane %v491, %v498
    %v501 = vunpack.c.l.s4 1966171168
    %v502 = vunpack.c.0.s8 %v501
    %v503 = vlaneseq
    %v504 = vshrl.u32 %v503, 7
    %v505 = vsub.s32 %v502, %v504
    %v506 = vrot.slane %v492, %v505
    %v507 = vlaneseq
    %v508 = vshrl.u32 %v507, 7
    %v509 = vsub.s32 0, %v508
    %v510 = vrot.slane %v499, %v509
    %v511 = vlaneseq
    %v512 = vshrl.u32 %v511, 7
    %v513 = vsub.s32 0, %v512
    %v514 = vrot.slane %v506, %v513
    %515 = vrot.lane.b32.xlu0 %v510, 64
    %v516 = vpop.permute.xlu0 %515
    %517 = vrot.lane.b32.xlu0 %v514, 64
    %v518 = vpop.permute.xlu0 %517
    %521 = vst.msk [vmem:[#allocation5 + $0x2] sm:$0x1] %vm290, %v516
    %522 = vst.msk [vmem:[#allocation5 + $0xa] sm:$0x1] %vm290, %v518
    %v523 = vpack.c.bf16 %v482, %v482
    %v525 = vrot.slane %v523, 2
    %526 = vrot.lane.b32.xlu0 %v525, 64
    %v527 = vpop.permute.xlu0 %526
    %v529 = vsel %vm105, %v527, 0
    %531 = vmatprep.subr.bf16.mxu0 0
    %532 = vmatpush1.bf16.msra.mxu0 0
    %533 = vmatprep.subr.bf16.mxu0 0
    %534 = vmatpush1.bf16.msra.mxu0 0
    %535 = vmatprep.subr.bf16.mxu0 0
    %536 = vmatpush1.bf16.msra.mxu0 0
    %537 = vmatprep.subr.bf16.mxu0 0
    %538 = vmatpush1.bf16.msra.mxu0 0
    %539 = vmatprep.subr.bf16.mxu0 %v183
    %540 = vmatpush1.bf16.msra.mxu0 %v182
    %541 = vmatprep.subr.bf16.mxu0 %v181
    %542 = vmatpush1.bf16.msra.mxu0 %v180
    %543 = vmatprep.subr.bf16.mxu0 %v179
    %544 = vmatpush1.bf16.msra.mxu0 %v178
    %545 = vmatprep.subr.bf16.mxu0 %v177
    %546 = vmatpush1.bf16.msra.mxu0 %v176
    %547 = vmatprep.subr.bf16.mxu0 0
    %548 = vmatpush2.bf16.msra.mxu0 0
    %549 = vmatprep.subr.bf16.mxu0 0
    %550 = vmatpush2.bf16.msra.mxu0 0
    %551 = vmatprep.subr.bf16.mxu0 0
    %552 = vmatpush2.bf16.msra.mxu0 0
    %553 = vmatprep.subr.bf16.mxu0 0
    %554 = vmatpush2.bf16.msra.mxu0 0
    %555 = vmatprep.subr.bf16.mxu0 0
    %556 = vmatpush2.bf16.msra.mxu0 0
    %557 = vmatprep.subr.bf16.mxu0 0
    %558 = vmatpush2.bf16.msra.mxu0 0
    %559 = vmatprep.subr.bf16.mxu0 0
    %560 = vmatpush2.bf16.msra.mxu0 0
    %561 = vmatprep.subr.bf16.mxu0 0
    %562 = vmatpush2.bf16.msra.mxu0 0
    %563 = vmatprep.mubr.bf16.mxu0 0
    %564 = vmatmul.mubr.bf16.gmra.mxu0 %v529
    %v565 = vpop.f32.mrf.mxu0
    %v566 = vadd.f32 0.0, %v565
    %v567 = vpop.f32.mrf.mxu0
    %v568 = vadd.f32 0.0, %v567
    %v569 = vpop.f32.mrf.mxu0
    %v570 = vpop.f32.mrf.mxu0
    %571 = vdwg.mxu0
    %v574 = vrot.slane %v566, 2
    %v575 = vrot.slane %v568, 2
    %v578 = vadd.f32 %v144, %v574
    %v579 = vadd.f32 %v146, %v575
    %v580 = vtanh.pop %v578
    %v581 = vtanh.pop %v579
    %v582 = vmul.f32 %v580, 0.5
    %v583 = vadd.f32 %v582, 0.5
    %v584 = vmul.f32 %v581, 0.5
    %v585 = vadd.f32 %v584, 0.5
    %v587 = vrot.slane %v480, 6
    %v589 = vmul.f32 %v583, %v587
    %v590 = vmul.f32 %v583, %v581
    %592 = vrot.lane.b32.xlu0 %v590, 64
    %v593 = vpop.permute.xlu0 %592
    %v595 = vadd.f32 %v589, %v593
    %v596 = vtanh.pop %v595
    %v597 = vmul.f32 %v585, %v596
    %v599 = vcombine.high %v597, %v597
    %v601 = vunpack.c.l.s4 1966171168
    %v602 = vunpack.c.0.s8 %v601
    %v603 = vlaneseq
    %v604 = vshrl.u32 %v603, 7
    %v605 = vsub.s32 %v602, %v604
    %v606 = vrot.slane %v599, %v605
    %v607 = vcombine.high %v606, %v606
    %v609 = vunpack.c.l.s4 1966171168
    %v610 = vunpack.c.0.s8 %v609
    %v611 = vlaneseq
    %v612 = vshrl.u32 %v611, 7
    %v613 = vsub.s32 %v610, %v612
    %v614 = vrot.slane %v606, %v613
    %v616 = vunpack.c.l.s4 1966171168
    %v617 = vunpack.c.0.s8 %v616
    %v618 = vlaneseq
    %v619 = vshrl.u32 %v618, 7
    %v620 = vsub.s32 %v617, %v619
    %v621 = vrot.slane %v607, %v620
    %v622 = vcombine.high %v614, %v614
    %v623 = vcombine.high %v621, %v621
    %v624 = vlaneseq
    %v625 = vshrl.u32 %v624, 7
    %v626 = vsub.s32 0, %v625
    %v627 = vrot.slane %v622, %v626
    %v628 = vlaneseq
    %v629 = vshrl.u32 %v628, 7
    %v630 = vsub.s32 0, %v629
    %v631 = vrot.slane %v623, %v630
    %632 = vrot.lane.b32.xlu0 %v627, 64
    %v633 = vpop.permute.xlu0 %632
    %634 = vrot.lane.b32.xlu0 %v631, 64
    %v635 = vpop.permute.xlu0 %634
    %638 = vst.msk [vmem:[#allocation5 + $0x3] sm:$0x1] %vm290, %v633
    %639 = vst.msk [vmem:[#allocation5 + $0xb] sm:$0x1] %vm290, %v635
    %v640 = vpack.c.bf16 %v597, %v597
    %v642 = vrot.slane %v640, 3
    %643 = vrot.lane.b32.xlu0 %v642, 64
    %v644 = vpop.permute.xlu0 %643
    %v646 = vsel %vm105, %v644, 0
    %648 = vmatprep.subr.bf16.mxu0 0
    %649 = vmatpush1.bf16.msra.mxu0 0
    %650 = vmatprep.subr.bf16.mxu0 0
    %651 = vmatpush1.bf16.msra.mxu0 0
    %652 = vmatprep.subr.bf16.mxu0 0
    %653 = vmatpush1.bf16.msra.mxu0 0
    %654 = vmatprep.subr.bf16.mxu0 0
    %655 = vmatpush1.bf16.msra.mxu0 0
    %656 = vmatprep.subr.bf16.mxu0 %v183
    %657 = vmatpush1.bf16.msra.mxu0 %v182
    %658 = vmatprep.subr.bf16.mxu0 %v181
    %659 = vmatpush1.bf16.msra.mxu0 %v180
    %660 = vmatprep.subr.bf16.mxu0 %v179
    %661 = vmatpush1.bf16.msra.mxu0 %v178
    %662 = vmatprep.subr.bf16.mxu0 %v177
    %663 = vmatpush1.bf16.msra.mxu0 %v176
    %664 = vmatprep.subr.bf16.mxu0 0
    %665 = vmatpush2.bf16.msra.mxu0 0
    %666 = vmatprep.subr.bf16.mxu0 0
    %667 = vmatpush2.bf16.msra.mxu0 0
    %668 = vmatprep.subr.bf16.mxu0 0
    %669 = vmatpush2.bf16.msra.mxu0 0
    %670 = vmatprep.subr.bf16.mxu0 0
    %671 = vmatpush2.bf16.msra.mxu0 0
    %672 = vmatprep.subr.bf16.mxu0 0
    %673 = vmatpush2.bf16.msra.mxu0 0
    %674 = vmatprep.subr.bf16.mxu0 0
    %675 = vmatpush2.bf16.msra.mxu0 0
    %676 = vmatprep.subr.bf16.mxu0 0
    %677 = vmatpush2.bf16.msra.mxu0 0
    %678 = vmatprep.subr.bf16.mxu0 0
    %679 = vmatpush2.bf16.msra.mxu0 0
    %680 = vmatprep.mubr.bf16.mxu0 0
    %681 = vmatmul.mubr.bf16.gmra.mxu0 %v646
    %v682 = vpop.f32.mrf.mxu0
    %v683 = vadd.f32 0.0, %v682
    %v684 = vpop.f32.mrf.mxu0
    %v685 = vadd.f32 0.0, %v684
    %v686 = vpop.f32.mrf.mxu0
    %v687 = vpop.f32.mrf.mxu0
    %688 = vdwg.mxu0
    %v689 = vadd.f32 %v148, %v683
    %v690 = vadd.f32 %v150, %v685
    %v691 = vtanh.pop %v689
    %v692 = vtanh.pop %v690
    %v693 = vmul.f32 %v691, 0.5
    %v694 = vadd.f32 %v693, 0.5
    %v695 = vmul.f32 %v692, 0.5
    %v696 = vadd.f32 %v695, 0.5
    %v698 = vrot.slane %v595, 6
    %v700 = vmul.f32 %v694, %v698
    %v701 = vmul.f32 %v694, %v692
    %703 = vrot.lane.b32.xlu0 %v701, 64
    %v704 = vpop.permute.xlu0 %703
    %v706 = vadd.f32 %v700, %v704
    %v707 = vtanh.pop %v706
    %v708 = vmul.f32 %v696, %v707
    %v711 = vunpack.c.l.s4 1966171168
    %v712 = vunpack.c.0.s8 %v711
    %v713 = vlaneseq
    %v714 = vshrl.u32 %v713, 7
    %v715 = vsub.s32 %v712, %v714
    %v716 = vrot.slane %v708, %v715
    %v717 = vcombine.high %v716, %v716
    %v719 = vunpack.c.l.s4 1966171168
    %v720 = vunpack.c.0.s8 %v719
    %v721 = vlaneseq
    %v722 = vshrl.u32 %v721, 7
    %v723 = vsub.s32 %v720, %v722
    %v724 = vrot.slane %v716, %v723
    %v726 = vunpack.c.l.s4 1966171168
    %v727 = vunpack.c.0.s8 %v726
    %v728 = vlaneseq
    %v729 = vshrl.u32 %v728, 7
    %v730 = vsub.s32 %v727, %v729
    %v731 = vrot.slane %v717, %v730
    %v732 = vlaneseq
    %v733 = vshrl.u32 %v732, 7
    %v734 = vsub.s32 0, %v733
    %v735 = vrot.slane %v724, %v734
    %v736 = vlaneseq
    %v737 = vshrl.u32 %v736, 7
    %v738 = vsub.s32 0, %v737
    %v739 = vrot.slane %v731, %v738
    %740 = vrot.lane.b32.xlu0 %v735, 64
    %v741 = vpop.permute.xlu0 %740
    %742 = vrot.lane.b32.xlu0 %v739, 64
    %v743 = vpop.permute.xlu0 %742
    %746 = vst.msk [vmem:[#allocation5 + $0x4] sm:$0x1] %vm290, %v741
    %747 = vst.msk [vmem:[#allocation5 + $0xc] sm:$0x1] %vm290, %v743
    %v748 = vpack.c.bf16 %v708, %v708
    %750 = vrot.lane.b32.xlu0 %v748, 64
    %v751 = vpop.permute.xlu0 %750
    %v753 = vsel %vm105, %v751, 0
    %755 = vmatprep.subr.bf16.mxu0 0
    %756 = vmatpush1.bf16.msra.mxu0 0
    %757 = vmatprep.subr.bf16.mxu0 0
    %758 = vmatpush1.bf16.msra.mxu0 0
    %759 = vmatprep.subr.bf16.mxu0 0
    %760 = vmatpush1.bf16.msra.mxu0 0
    %761 = vmatprep.subr.bf16.mxu0 0
    %762 = vmatpush1.bf16.msra.mxu0 0
    %763 = vmatprep.subr.bf16.mxu0 %v183
    %764 = vmatpush1.bf16.msra.mxu0 %v182
    %765 = vmatprep.subr.bf16.mxu0 %v181
    %766 = vmatpush1.bf16.msra.mxu0 %v180
    %767 = vmatprep.subr.bf16.mxu0 %v179
    %768 = vmatpush1.bf16.msra.mxu0 %v178
    %769 = vmatprep.subr.bf16.mxu0 %v177
    %770 = vmatpush1.bf16.msra.mxu0 %v176
    %771 = vmatprep.subr.bf16.mxu0 0
    %772 = vmatpush2.bf16.msra.mxu0 0
    %773 = vmatprep.subr.bf16.mxu0 0
    %774 = vmatpush2.bf16.msra.mxu0 0
    %775 = vmatprep.subr.bf16.mxu0 0
    %776 = vmatpush2.bf16.msra.mxu0 0
    %777 = vmatprep.subr.bf16.mxu0 0
    %778 = vmatpush2.bf16.msra.mxu0 0
    %779 = vmatprep.subr.bf16.mxu0 0
    %780 = vmatpush2.bf16.msra.mxu0 0
    %781 = vmatprep.subr.bf16.mxu0 0
    %782 = vmatpush2.bf16.msra.mxu0 0
    %783 = vmatprep.subr.bf16.mxu0 0
    %784 = vmatpush2.bf16.msra.mxu0 0
    %785 = vmatprep.subr.bf16.mxu0 0
    %786 = vmatpush2.bf16.msra.mxu0 0
    %787 = vmatprep.mubr.bf16.mxu0 0
    %788 = vmatmul.mubr.bf16.gmra.mxu0 %v753
    %v789 = vpop.f32.mrf.mxu0
    %v790 = vadd.f32 0.0, %v789
    %v791 = vpop.f32.mrf.mxu0
    %v792 = vadd.f32 0.0, %v791
    %v793 = vpop.f32.mrf.mxu0
    %v794 = vpop.f32.mrf.mxu0
    %795 = vdwg.mxu0
    %v798 = vrot.slane %v790, 6
    %v799 = vrot.slane %v792, 6
    %v802 = vadd.f32 %v148, %v798
    %v803 = vadd.f32 %v150, %v799
    %v804 = vtanh.pop %v802
    %v805 = vtanh.pop %v803
    %v806 = vmul.f32 %v804, 0.5
    %v807 = vadd.f32 %v806, 0.5
    %v808 = vmul.f32 %v805, 0.5
    %v809 = vadd.f32 %v808, 0.5
    %v811 = vrot.slane %v706, 6
    %v813 = vmul.f32 %v807, %v811
    %v814 = vmul.f32 %v807, %v805
    %816 = vrot.lane.b32.xlu0 %v814, 64
    %v817 = vpop.permute.xlu0 %816
    %v819 = vadd.f32 %v813, %v817
    %v820 = vtanh.pop %v819
    %v821 = vmul.f32 %v809, %v820
    %v824 = vunpack.c.l.s4 1966171168
    %v825 = vunpack.c.0.s8 %v824
    %v826 = vlaneseq
    %v827 = vshrl.u32 %v826, 7
    %v828 = vsub.s32 %v825, %v827
    %v829 = vrot.slane %v821, %v828
    %v830 = vcombine.high %v829, %v829
    %v832 = vunpack.c.l.s4 1966171168
    %v833 = vunpack.c.0.s8 %v832
    %v834 = vlaneseq
    %v835 = vshrl.u32 %v834, 7
    %v836 = vsub.s32 %v833, %v835
    %v837 = vrot.slane %v829, %v836
    %v839 = vunpack.c.l.s4 1966171168
    %v840 = vunpack.c.0.s8 %v839
    %v841 = vlaneseq
    %v842 = vshrl.u32 %v841, 7
    %v843 = vsub.s32 %v840, %v842
    %v844 = vrot.slane %v830, %v843
    %v845 = vcombine.high %v837, %v837
    %v846 = vcombine.high %v844, %v844
    %v847 = vlaneseq
    %v848 = vshrl.u32 %v847, 7
    %v849 = vsub.s32 0, %v848
    %v850 = vrot.slane %v845, %v849
    %v851 = vlaneseq
    %v852 = vshrl.u32 %v851, 7
    %v853 = vsub.s32 0, %v852
    %v854 = vrot.slane %v846, %v853
    %855 = vrot.lane.b32.xlu0 %v850, 64
    %v856 = vpop.permute.xlu0 %855
    %857 = vrot.lane.b32.xlu0 %v854, 64
    %v858 = vpop.permute.xlu0 %857
    %861 = vst.msk [vmem:[#allocation5 + $0x5] sm:$0x1] %vm290, %v856
    %862 = vst.msk [vmem:[#allocation5 + $0xd] sm:$0x1] %vm290, %v858
    %v863 = vpack.c.bf16 %v821, %v821
    %v865 = vrot.slane %v863, 1
    %866 = vrot.lane.b32.xlu0 %v865, 64
    %v867 = vpop.permute.xlu0 %866
    %v869 = vsel %vm105, %v867, 0
    %871 = vmatprep.subr.bf16.mxu0 0
    %872 = vmatpush1.bf16.msra.mxu0 0
    %873 = vmatprep.subr.bf16.mxu0 0
    %874 = vmatpush1.bf16.msra.mxu0 0
    %875 = vmatprep.subr.bf16.mxu0 0
    %876 = vmatpush1.bf16.msra.mxu0 0
    %877 = vmatprep.subr.bf16.mxu0 0
    %878 = vmatpush1.bf16.msra.mxu0 0
    %879 = vmatprep.subr.bf16.mxu0 %v183
    %880 = vmatpush1.bf16.msra.mxu0 %v182
    %881 = vmatprep.subr.bf16.mxu0 %v181
    %882 = vmatpush1.bf16.msra.mxu0 %v180
    %883 = vmatprep.subr.bf16.mxu0 %v179
    %884 = vmatpush1.bf16.msra.mxu0 %v178
    %885 = vmatprep.subr.bf16.mxu0 %v177
    %886 = vmatpush1.bf16.msra.mxu0 %v176
    %887 = vmatprep.subr.bf16.mxu0 0
    %888 = vmatpush2.bf16.msra.mxu0 0
    %889 = vmatprep.subr.bf16.mxu0 0
    %890 = vmatpush2.bf16.msra.mxu0 0
    %891 = vmatprep.subr.bf16.mxu0 0
    %892 = vmatpush2.bf16.msra.mxu0 0
    %893 = vmatprep.subr.bf16.mxu0 0
    %894 = vmatpush2.bf16.msra.mxu0 0
    %895 = vmatprep.subr.bf16.mxu0 0
    %896 = vmatpush2.bf16.msra.mxu0 0
    %897 = vmatprep.subr.bf16.mxu0 0
    %898 = vmatpush2.bf16.msra.mxu0 0
    %899 = vmatprep.subr.bf16.mxu0 0
    %900 = vmatpush2.bf16.msra.mxu0 0
    %901 = vmatprep.subr.bf16.mxu0 0
    %902 = vmatpush2.bf16.msra.mxu0 0
    %903 = vmatprep.mubr.bf16.mxu0 0
    %904 = vmatmul.mubr.bf16.gmra.mxu0 %v869
    %v905 = vpop.f32.mrf.mxu0
    %v906 = vadd.f32 0.0, %v905
    %v907 = vpop.f32.mrf.mxu0
    %v908 = vadd.f32 0.0, %v907
    %v909 = vpop.f32.mrf.mxu0
    %v910 = vpop.f32.mrf.mxu0
    %911 = vdwg.mxu0
    %v914 = vrot.slane %v906, 4
    %v915 = vrot.slane %v908, 4
    %v918 = vadd.f32 %v148, %v914
    %v919 = vadd.f32 %v150, %v915
    %v920 = vtanh.pop %v918
    %v921 = vtanh.pop %v919
    %v922 = vmul.f32 %v920, 0.5
    %v923 = vadd.f32 %v922, 0.5
    %v924 = vmul.f32 %v921, 0.5
    %v925 = vadd.f32 %v924, 0.5
    %v927 = vrot.slane %v819, 6
    %v929 = vmul.f32 %v923, %v927
    %v930 = vmul.f32 %v923, %v921
    %932 = vrot.lane.b32.xlu0 %v930, 64
    %v933 = vpop.permute.xlu0 %932
    %v935 = vadd.f32 %v929, %v933
    %v936 = vtanh.pop %v935
    %v937 = vmul.f32 %v925, %v936
    %v939 = vcombine.high %v937, %v937
    %v941 = vunpack.c.l.s4 1966171168
    %v942 = vunpack.c.0.s8 %v941
    %v943 = vlaneseq
    %v944 = vshrl.u32 %v943, 7
    %v945 = vsub.s32 %v942, %v944
    %v946 = vrot.slane %v939, %v945
    %v947 = vcombine.high %v946, %v946
    %v949 = vunpack.c.l.s4 1966171168
    %v950 = vunpack.c.0.s8 %v949
    %v951 = vlaneseq
    %v952 = vshrl.u32 %v951, 7
    %v953 = vsub.s32 %v950, %v952
    %v954 = vrot.slane %v946, %v953
    %v956 = vunpack.c.l.s4 1966171168
    %v957 = vunpack.c.0.s8 %v956
    %v958 = vlaneseq
    %v959 = vshrl.u32 %v958, 7
    %v960 = vsub.s32 %v957, %v959
    %v961 = vrot.slane %v947, %v960
    %v962 = vlaneseq
    %v963 = vshrl.u32 %v962, 7
    %v964 = vsub.s32 0, %v963
    %v965 = vrot.slane %v954, %v964
    %v966 = vlaneseq
    %v967 = vshrl.u32 %v966, 7
    %v968 = vsub.s32 0, %v967
    %v969 = vrot.slane %v961, %v968
    %970 = vrot.lane.b32.xlu0 %v965, 64
    %v971 = vpop.permute.xlu0 %970
    %972 = vrot.lane.b32.xlu0 %v969, 64
    %v973 = vpop.permute.xlu0 %972
    %976 = vst.msk [vmem:[#allocation5 + $0x6] sm:$0x1] %vm290, %v971
    %977 = vst.msk [vmem:[#allocation5 + $0xe] sm:$0x1] %vm290, %v973
    %v978 = vpack.c.bf16 %v937, %v937
    %v980 = vrot.slane %v978, 2
    %981 = vrot.lane.b32.xlu0 %v980, 64
    %v982 = vpop.permute.xlu0 %981
    %v984 = vsel %vm105, %v982, 0
    %986 = vmatprep.subr.bf16.mxu0 0
    %987 = vmatpush1.bf16.msra.mxu0 0
    %988 = vmatprep.subr.bf16.mxu0 0
    %989 = vmatpush1.bf16.msra.mxu0 0
    %990 = vmatprep.subr.bf16.mxu0 0
    %991 = vmatpush1.bf16.msra.mxu0 0
    %992 = vmatprep.subr.bf16.mxu0 0
    %993 = vmatpush1.bf16.msra.mxu0 0
    %994 = vmatprep.subr.bf16.mxu0 %v183
    %995 = vmatpush1.bf16.msra.mxu0 %v182
    %996 = vmatprep.subr.bf16.mxu0 %v181
    %997 = vmatpush1.bf16.msra.mxu0 %v180
    %998 = vmatprep.subr.bf16.mxu0 %v179
    %999 = vmatpush1.bf16.msra.mxu0 %v178
    %1000 = vmatprep.subr.bf16.mxu0 %v177
    %1001 = vmatpush1.bf16.msra.mxu0 %v176
    %1002 = vmatprep.subr.bf16.mxu0 0
    %1003 = vmatpush2.bf16.msra.mxu0 0
    %1004 = vmatprep.subr.bf16.mxu0 0
    %1005 = vmatpush2.bf16.msra.mxu0 0
    %1006 = vmatprep.subr.bf16.mxu0 0
    %1007 = vmatpush2.bf16.msra.mxu0 0
    %1008 = vmatprep.subr.bf16.mxu0 0
    %1009 = vmatpush2.bf16.msra.mxu0 0
    %1010 = vmatprep.subr.bf16.mxu0 0
    %1011 = vmatpush2.bf16.msra.mxu0 0
    %1012 = vmatprep.subr.bf16.mxu0 0
    %1013 = vmatpush2.bf16.msra.mxu0 0
    %1014 = vmatprep.subr.bf16.mxu0 0
    %1015 = vmatpush2.bf16.msra.mxu0 0
    %1016 = vmatprep.subr.bf16.mxu0 0
    %1017 = vmatpush2.bf16.msra.mxu0 0
    %1018 = vmatprep.mubr.bf16.mxu0 0
    %1019 = vmatmul.mubr.bf16.gmra.mxu0 %v984
    %v1020 = vpop.f32.mrf.mxu0
    %v1021 = vadd.f32 0.0, %v1020
    %v1022 = vpop.f32.mrf.mxu0
    %v1023 = vadd.f32 0.0, %v1022
    %v1024 = vpop.f32.mrf.mxu0
    %v1025 = vpop.f32.mrf.mxu0
    %1026 = vdwg.mxu0
    %v1029 = vrot.slane %v1021, 2
    %v1030 = vrot.slane %v1023, 2
    %v1033 = vadd.f32 %v148, %v1029
    %v1034 = vadd.f32 %v150, %v1030
    %v1035 = vtanh.pop %v1033
    %v1036 = vtanh.pop %v1034
    %v1037 = vmul.f32 %v1035, 0.5
    %v1038 = vadd.f32 %v1037, 0.5
    %v1039 = vmul.f32 %v1036, 0.5
    %v1040 = vadd.f32 %v1039, 0.5
    %v1042 = vrot.slane %v935, 6
    %v1044 = vmul.f32 %v1038, %v1042
    %v1045 = vmul.f32 %v1038, %v1036
    %1047 = vrot.lane.b32.xlu0 %v1045, 64
    %v1048 = vpop.permute.xlu0 %1047
    %v1050 = vadd.f32 %v1044, %v1048
    %v1051 = vtanh.pop %v1050
    %v1052 = vmul.f32 %v1040, %v1051
    %v1054 = vcombine.high %v1052, %v1052
    %v1056 = vunpack.c.l.s4 1966171168
    %v1057 = vunpack.c.0.s8 %v1056
    %v1058 = vlaneseq
    %v1059 = vshrl.u32 %v1058, 7
    %v1060 = vsub.s32 %v1057, %v1059
    %v1061 = vrot.slane %v1054, %v1060
    %v1062 = vcombine.high %v1061, %v1061
    %v1064 = vunpack.c.l.s4 1966171168
    %v1065 = vunpack.c.0.s8 %v1064
    %v1066 = vlaneseq
    %v1067 = vshrl.u32 %v1066, 7
    %v1068 = vsub.s32 %v1065, %v1067
    %v1069 = vrot.slane %v1061, %v1068
    %v1071 = vunpack.c.l.s4 1966171168
    %v1072 = vunpack.c.0.s8 %v1071
    %v1073 = vlaneseq
    %v1074 = vshrl.u32 %v1073, 7
    %v1075 = vsub.s32 %v1072, %v1074
    %v1076 = vrot.slane %v1062, %v1075
    %v1077 = vcombine.high %v1069, %v1069
    %v1078 = vcombine.high %v1076, %v1076
    %v1079 = vlaneseq
    %v1080 = vshrl.u32 %v1079, 7
    %v1081 = vsub.s32 0, %v1080
    %v1082 = vrot.slane %v1077, %v1081
    %v1083 = vlaneseq
    %v1084 = vshrl.u32 %v1083, 7
    %v1085 = vsub.s32 0, %v1084
    %v1086 = vrot.slane %v1078, %v1085
    %1087 = vrot.lane.b32.xlu0 %v1082, 64
    %v1088 = vpop.permute.xlu0 %1087
    %1089 = vrot.lane.b32.xlu0 %v1086, 64
    %v1090 = vpop.permute.xlu0 %1089
    %1093 = vst.msk [vmem:[#allocation5 + $0x7] sm:$0x1] %vm290, %v1088
    %1094 = vst.msk [vmem:[#allocation5 + $0xf] sm:$0x1] %vm290, %v1090
    // Predicated region
    $region18: #{lstm_forward.1} parent=1 // pred_check
      _
    $region19: #{lstm_forward.1} parent=1 // pred_check_branch
      %1096 = sbr.rel (0) target = $region21
    $region20: #{lstm_forward.1} parent=1 // pred_region
      %s1098 = ssub.s32 256, 256
      %1099 = vsyncadd [#allocation4], %s1098
      %s1100 = sshll.u32 [#allocation5], 4
      %s1101 = int_to_ptr.vmem [resolvable:$true] %s1100
      %1106 = dma.vmem_to_hbm [thread:$0]  %s1101, 256, %s3, [#allocation4], 128, 128, 8
    $region21: #{lstm_forward.1} parent=1 // pred_fallthru
      _
    // Predicated region
    $region22: #{lstm_forward.1} parent=1 // pred_check
      _
    $region23: #{lstm_forward.1} parent=1 // pred_check_branch
      %1108 = sbr.rel (0) target = $region25
    $region24: #{lstm_forward.1} parent=1 // pred_region
      %1109 = dma.done [#allocation4], 256
    $region25: #{lstm_forward.1} parent=1 // pred_fallthru
      _
    %1110 = vsyncpa [#allocation3], 1
    %1111 = vsyncpa [#allocation4], 1

</llo_original>
